<compile_context>
chip_gen: v6e
topology: v6e:2x2x1
jax: 0.10.0
libtpu: 0.0.40
codegen_flags: <defaults>
</compile_context>

<pallas_src>
import jax
import jax.numpy as jnp
from jax.experimental import pallas as pl
from jax.experimental.pallas import tpu as pltpu


_MAX_UNROLL_C = 8  # unroll channel loops only for small C (typical 1/3/4)


def _greyscale_kernel(x_ref, o_ref):
    # x_ref / o_ref: (nB, C, T) tile, T is the lane-dense spatial tile.
    nB, C, T = x_ref.shape

    if C <= _MAX_UNROLL_C:
        # Per-channel accumulation keeps only one f32 (nB,1,T) slab live
        # (matters for bf16/fp8 inputs; no-op cast for f32).
        acc = x_ref[:, 0:1, :].astype(jnp.float32)
        for c in range(1, C):
            acc = acc + x_ref[:, c:c + 1, :].astype(jnp.float32)
    else:
        acc = jnp.sum(x_ref[...].astype(jnp.float32), axis=1, keepdims=True)

    mean = (acc * jnp.float32(1.0 / C)).astype(o_ref.dtype)  # (nB, 1, T)

    if C <= _MAX_UNROLL_C:
        # Stream the mean slab per channel instead of materializing C copies.
        for c in range(C):
            o_ref[:, c:c + 1, :] = mean
    else:
        o_ref[...] = jnp.broadcast_to(mean, (nB, C, T))


def _pick_spatial_tile(hw, c, itemsize, budget_bytes=12 << 20):
    """Largest spatial tile (multiple of 128, or full extent) within a VMEM budget.

    Per-step working set ~= 2x input + 2x output (double-buffered) + f32 acc.
    Budget of ~12 MiB keeps comfortable headroom on every generation
    (default scoped VMEM: 16 MiB v5e, 32 MiB v6e/v7x; 64 MiB physical on v7x).
    """
    per_elem = 4 * c * itemsize + 4
    t_max = max(128, budget_bytes // per_elem)
    if hw <= t_max:
        return hw                      # whole spatial extent fits in one block
    return (t_max // 128) * 128        # lane-aligned; partial edge block is OK


def _pick_batch_pack(n, c, hw, t, itemsize, target_bytes=2 << 20, max_pack=8):
    """Pack several batch elements per grid step for small images."""
    if t < hw:
        return 1                       # already tiling spatially
    per_image = max(1, c * hw * itemsize)
    nb = max(1, min(n, max_pack, target_bytes // per_image))
    while n % nb != 0:                 # keep the batch grid exact
        nb -= 1
    return nb


def to_greyscale(x):
    """Pallas implementation of x.mean(-3, keepdim=True).expand_as(x) for NCHW."""
    N, C, H, W = x.shape
    HW = H * W
    itemsize = jnp.dtype(x.dtype).itemsize

    T = _pick_spatial_tile(HW, C, itemsize)
    nB = _pick_batch_pack(N, C, HW, T, itemsize)
    grid = (N // nB, pl.cdiv(HW, T))

    x2 = x.reshape(N, C, HW)           # lane-dense layout (contiguous reshape)

    out = pl.pallas_call(
        _greyscale_kernel,
        out_shape=jax.ShapeDtypeStruct((N, C, HW), x.dtype),
        grid_spec=pltpu.PrefetchScalarGridSpec(
            num_scalar_prefetch=0,
            grid=grid,
            in_specs=[pl.BlockSpec((nB, C, T), lambda b, t: (b, 0, t))],
            out_specs=pl.BlockSpec((nB, C, T), lambda b, t: (b, 0, t)),
        ),
        compiler_params=pltpu.CompilerParams(
            dimension_semantics=("parallel", "parallel"),
            vmem_limit_bytes=48 * 1024 * 1024,
        ),
    )(x2)

    return out.reshape(N, C, H, W)


if __name__ == "__main__":
    key = jax.random.PRNGKey(0)
    x = jax.random.normal(key, (2, 4, 16, 16), dtype=jnp.float32)

    out = to_greyscale(x)
    out = jax.block_until_ready(out)

    # Reference check against plain JAX semantics of the PyTorch module.
    ref = jnp.broadcast_to(jnp.mean(x, axis=-3, keepdims=True), x.shape)
    assert out.shape == x.shape and out.dtype == x.dtype
    assert jnp.allclose(out, ref, atol=1e-6, rtol=1e-6)

    print("KERNEL_OK")
</pallas_src>

<mosaic_0001>
module attributes {stable_mosaic.version = 11 : i64} {
  func.func @_greyscale_kernel(%arg0: i32, %arg1: i32, %arg2: memref<2x4x256xf32, #tpu.memory_space<vmem>>, %arg3: memref<2x4x256xf32, #tpu.memory_space<vmem>>) attributes {dimension_semantics = [#tpu.dimension_semantics<parallel>, #tpu.dimension_semantics<parallel>], iteration_bounds = array<i64: 1, 1>, scalar_prefetch = 0 : i64, scratch_operands = 0 : i64, tpu.core_type = #tpu.core_type<tc>, window_params = [{transform_indices = @transform_0, window_bounds = array<i64: 2, 4, 256>}, {transform_indices = @transform_1, window_bounds = array<i64: 2, 4, 256>}]} {
    %c0 = arith.constant 0 : index
    %c0_0 = arith.constant 0 : index
    %c0_1 = arith.constant 0 : index
    %0 = vector.load %arg2[%c0, %c0_0, %c0_1] : memref<2x4x256xf32, #tpu.memory_space<vmem>>, vector<2x1x256xf32>
    %c0_2 = arith.constant 0 : index
    %c1 = arith.constant 1 : index
    %c0_3 = arith.constant 0 : index
    %1 = vector.load %arg2[%c0_2, %c1, %c0_3] : memref<2x4x256xf32, #tpu.memory_space<vmem>>, vector<2x1x256xf32>
    %2 = arith.addf %0, %1 : vector<2x1x256xf32>
    %c0_4 = arith.constant 0 : index
    %c2 = arith.constant 2 : index
    %c0_5 = arith.constant 0 : index
    %3 = vector.load %arg2[%c0_4, %c2, %c0_5] : memref<2x4x256xf32, #tpu.memory_space<vmem>>, vector<2x1x256xf32>
    %4 = arith.addf %2, %3 : vector<2x1x256xf32>
    %c0_6 = arith.constant 0 : index
    %c3 = arith.constant 3 : index
    %c0_7 = arith.constant 0 : index
    %5 = vector.load %arg2[%c0_6, %c3, %c0_7] : memref<2x4x256xf32, #tpu.memory_space<vmem>>, vector<2x1x256xf32>
    %6 = arith.addf %4, %5 : vector<2x1x256xf32>
    %cst = arith.constant 2.500000e-01 : f32
    %7 = vector.broadcast %cst : f32 to vector<2x1x256xf32>
    %8 = arith.mulf %6, %7 : vector<2x1x256xf32>
    %c0_8 = arith.constant 0 : index
    %c0_9 = arith.constant 0 : index
    %c0_10 = arith.constant 0 : index
    %9 = vector.load %arg3[%c0_8, %c0_9, %c0_10] : memref<2x4x256xf32, #tpu.memory_space<vmem>>, vector<2x1x256xf32>
    tpu.vector_store %arg3[%c0_8, %c0_9, %c0_10], %8 {strides = array<i32>} : memref<2x4x256xf32, #tpu.memory_space<vmem>>, vector<2x1x256xf32>,
    %c0_11 = arith.constant 0 : index
    %c1_12 = arith.constant 1 : index
    %c0_13 = arith.constant 0 : index
    %10 = vector.load %arg3[%c0_11, %c1_12, %c0_13] : memref<2x4x256xf32, #tpu.memory_space<vmem>>, vector<2x1x256xf32>
    tpu.vector_store %arg3[%c0_11, %c1_12, %c0_13], %8 {strides = array<i32>} : memref<2x4x256xf32, #tpu.memory_space<vmem>>, vector<2x1x256xf32>,
    %c0_14 = arith.constant 0 : index
    %c2_15 = arith.constant 2 : index
    %c0_16 = arith.constant 0 : index
    %11 = vector.load %arg3[%c0_14, %c2_15, %c0_16] : memref<2x4x256xf32, #tpu.memory_space<vmem>>, vector<2x1x256xf32>
    tpu.vector_store %arg3[%c0_14, %c2_15, %c0_16], %8 {strides = array<i32>} : memref<2x4x256xf32, #tpu.memory_space<vmem>>, vector<2x1x256xf32>,
    %c0_17 = arith.constant 0 : index
    %c3_18 = arith.constant 3 : index
    %c0_19 = arith.constant 0 : index
    %12 = vector.load %arg3[%c0_17, %c3_18, %c0_19] : memref<2x4x256xf32, #tpu.memory_space<vmem>>, vector<2x1x256xf32>
    tpu.vector_store %arg3[%c0_17, %c3_18, %c0_19], %8 {strides = array<i32>} : memref<2x4x256xf32, #tpu.memory_space<vmem>>, vector<2x1x256xf32>,
    return
  }
  func.func @transform_0(%arg0: i32, %arg1: i32) -> (i32, i32, i32) {
    %c0_i32 = arith.constant 0 : i32
    %c0_i32_0 = arith.constant 0 : i32
    return %arg0, %c0_i32, %arg1 : i32, i32, i32
  }
  func.func @transform_1(%arg0: i32, %arg1: i32) -> (i32, i32, i32) {
    %c0_i32 = arith.constant 0 : i32
    %c0_i32_0 = arith.constant 0 : i32
    return %arg0, %c0_i32, %arg1 : i32, i32, i32
  }
}

</mosaic_0001>

<llo_original>
// kernel: tpu_custom_call.1
$region0: #{tpu_custom_call.1}
  #allocation0 [shape = 'u32[]', space=smem, size = 0x4, offset = 0x4, fixed_abs, tag = 'smem constant byte address 0x4 - core index']
  #allocation1 [shape = 'u32[144,128]{1,0:T(1,128)}', space=vmem, size = 0x12000, scoped, tag = 'internal scratch']
  %s0 = inlined_call_operand.hbm [shape: f32[2,4,256], index: 0, kind: input, shape index: {}]
  %s1 = inlined_call_operand.hbm [shape: f32[2,4,256], index: 1, kind: output, shape index: {}]
  %s2 = sld [smem:[#allocation0]]
  $region18: #{tpu_custom_call.1} parent=0
    _
  %s4 = ssub.s32 1, %s2
  %s5 = scalar_select 0, %s4, %s2
  $region1: #{tpu_custom_call.1} parent=0
    #allocation2 [shape = 'u8[8192]{0}', space=vmem, size = 0x2000, scoped, tag = 'input window, operand 0, single buffered']
    #allocation3 [shape = 's32[1]{0}', space=sflag, size = 0x4, scoped, tag = 'scoped memory for tpu_custom_call.1']
    #allocation4 [shape = 's32[1]{0}', space=sflag, size = 0x4, scoped, tag = 'scoped memory for tpu_custom_call.1']
    #allocation5 [shape = 'u8[8192]{0}', space=vmem, size = 0x2000, scoped, tag = 'output window, operand 0, single buffered']
    %6 = vsyncpa [#allocation3], 0
    %7 = vsyncpa [#allocation4], 0
    // Predicated region
    $region2: #{tpu_custom_call.1} parent=1 // pred_check
      _
    $region3: #{tpu_custom_call.1} parent=1 // pred_check_branch
      %9 = sbr.rel (0) target = $region5
    $region4: #{tpu_custom_call.1} parent=1 // pred_region
      %s11 = ssub.s32 256, 256
      %12 = vsyncadd [#allocation3], %s11
      %s13 = sshll.u32 [#allocation2], 4
      %s14 = int_to_ptr.vmem [resolvable:$true] %s13
      %19 = dma.hbm_to_vmem [thread:$0]  %s0, 256, %s14, [#allocation3], 128, 128, 8
    $region5: #{tpu_custom_call.1} parent=1 // pred_fallthru
      _
    // Predicated region
    $region6: #{tpu_custom_call.1} parent=1 // pred_check
      _
    $region7: #{tpu_custom_call.1} parent=1 // pred_check_branch
      %21 = sbr.rel (0) target = $region9
    $region8: #{tpu_custom_call.1} parent=1 // pred_region
      %22 = dma.done [#allocation3], 256
    $region9: #{tpu_custom_call.1} parent=1 // pred_fallthru
      _
    %v23 = vld [vmem:[#allocation2] ss:$4 sm:$0x3]
    %s24 = scalar_lea.vmem [#allocation2], 8
    %v25 = vld [vmem:[%s24] ss:$4 sm:$0x3]
    %s26 = scalar_lea.vmem [#allocation2], 1
    %v27 = vld [vmem:[%s26] ss:$4 sm:$0x3]
    %s28 = scalar_lea.vmem [#allocation2], 9
    %v29 = vld [vmem:[%s28] ss:$4 sm:$0x3]
    %v30 = vadd.f32 %v23, %v27
    %v31 = vadd.f32 %v25, %v29
    %s32 = scalar_lea.vmem [#allocation2], 2
    %v33 = vld [vmem:[%s32] ss:$4 sm:$0x3]
    %s34 = scalar_lea.vmem [#allocation2], 10
    %v35 = vld [vmem:[%s34] ss:$4 sm:$0x3]
    %v36 = vadd.f32 %v30, %v33
    %v37 = vadd.f32 %v31, %v35
    %s38 = scalar_lea.vmem [#allocation2], 3
    %v39 = vld [vmem:[%s38] ss:$4 sm:$0x3]
    %s40 = scalar_lea.vmem [#allocation2], 11
    %v41 = vld [vmem:[%s40] ss:$4 sm:$0x3]
    %v42 = vadd.f32 %v36, %v39
    %v43 = vadd.f32 %v37, %v41
    %v44 = vmul.f32 %v42, 0.25
    %v45 = vmul.f32 %v43, 0.25
    %v46 = vlaneseq
    %vm47 = vcmp.ge.s32.totalorder %v46, 0
    %vm48 = vcmp.lt.s32.totalorder %v46, 256
    %vm49 = vmand %vm47, %vm48
    %50 = vst.msk [vmem:[#allocation5] ss:$4 sm:$0x3] %vm49, %v44
    %s51 = scalar_lea.vmem [#allocation5], 8
    %52 = vst.msk [vmem:[%s51] ss:$4 sm:$0x3] %vm49, %v45
    %s53 = scalar_lea.vmem [#allocation5], 1
    %54 = vst.msk [vmem:[%s53] ss:$4 sm:$0x3] %vm49, %v44
    %s55 = scalar_lea.vmem [#allocation5], 9
    %56 = vst.msk [vmem:[%s55] ss:$4 sm:$0x3] %vm49, %v45
    %s57 = scalar_lea.vmem [#allocation5], 2
    %58 = vst.msk [vmem:[%s57] ss:$4 sm:$0x3] %vm49, %v44
    %s59 = scalar_lea.vmem [#allocation5], 10
    %60 = vst.msk [vmem:[%s59] ss:$4 sm:$0x3] %vm49, %v45
    %s61 = scalar_lea.vmem [#allocation5], 3
    %62 = vst.msk [vmem:[%s61] ss:$4 sm:$0x3] %vm49, %v44
    %s63 = scalar_lea.vmem [#allocation5], 11
    %64 = vst.msk [vmem:[%s63] ss:$4 sm:$0x3] %vm49, %v45
    // Predicated region
    $region10: #{tpu_custom_call.1} parent=1 // pred_check
      _
    $region11: #{tpu_custom_call.1} parent=1 // pred_check_branch
      %66 = sbr.rel (0) target = $region13
    $region12: #{tpu_custom_call.1} parent=1 // pred_region
      %s68 = ssub.s32 256, 256
      %69 = vsyncadd [#allocation4], %s68
      %s70 = sshll.u32 [#allocation5], 4
      %s71 = int_to_ptr.vmem [resolvable:$true] %s70
      %76 = dma.vmem_to_hbm [thread:$0]  %s71, 256, %s1, [#allocation4], 128, 128, 8
    $region13: #{tpu_custom_call.1} parent=1 // pred_fallthru
      _
    // Predicated region
    $region14: #{tpu_custom_call.1} parent=1 // pred_check
      _
    $region15: #{tpu_custom_call.1} parent=1 // pred_check_branch
      %78 = sbr.rel (0) target = $region17
    $region16: #{tpu_custom_call.1} parent=1 // pred_region
      %79 = dma.done [#allocation4], 256
    $region17: #{tpu_custom_call.1} parent=1 // pred_fallthru
      _
    %80 = vsyncpa [#allocation3], 1
    %81 = vsyncpa [#allocation4], 1

</llo_original>
